<compile_context>
chip_gen: v5e
topology: v5e:2x2
jax: 0.10.0
libtpu: 0.0.40
codegen_flags: <defaults>
</compile_context>

<pallas_src>
import functools

import jax
import jax.numpy as jnp
from jax import lax
from jax.experimental import pallas as pl
from jax.experimental.pallas import tpu as pltpu


def _cosent_kernel(lab_col_ref, lab_row_ref, e0_ref, e1_ref, out_ref,
                   dot_ref, sq0_ref, sq1_ref, *, tk, D, n_chunks, needs_mask):
    """Grid axis 0 tiles the feature dim D.

    dot/sq0/sq1 scratch are (B, 128) lane-wise partial accumulators; the
    cross-lane reduction and the B x B logsumexp run only on the last step.
    """
    k = pl.program_id(0)

    @pl.when(k == 0)
    def _init():
        dot_ref[...] = jnp.zeros_like(dot_ref)
        sq0_ref[...] = jnp.zeros_like(sq0_ref)
        sq1_ref[...] = jnp.zeros_like(sq1_ref)

    # Native-dtype tiles, upcast in-register (v5e has no bf16 VPU).
    e0 = e0_ref[...].astype(jnp.float32)            # (B, tk)
    e1 = e1_ref[...].astype(jnp.float32)            # (B, tk)

    if needs_mask:
        # Tail (or undersized) block: zero the lanes past D.  Zeros are
        # harmless to the additive dot / norm^2 accumulators.
        lane = lax.broadcasted_iota(jnp.int32, e0.shape, 1)
        valid = (k * tk + lane) < D
        e0 = jnp.where(valid, e0, 0.0)
        e1 = jnp.where(valid, e1, 0.0)

    # Pure-VALU lane-wise accumulation over static, vreg-aligned 128-lane
    # chunks; no per-step cross-lane (XLU) reductions.
    d_acc = dot_ref[...]
    s0_acc = sq0_ref[...]
    s1_acc = sq1_ref[...]
    for j in range(n_chunks):
        c0 = e0[:, j * 128:(j + 1) * 128]
        c1 = e1[:, j * 128:(j + 1) * 128]
        d_acc = d_acc + c0 * c1
        s0_acc = s0_acc + c0 * c0
        s1_acc = s1_acc + c1 * c1
    dot_ref[...] = d_acc
    sq0_ref[...] = s0_acc
    sq1_ref[...] = s1_acc

    @pl.when(k == pl.num_programs(0) - 1)
    def _finalize():
        # Single cross-lane reduction of the lane partials.
        dot = jnp.sum(dot_ref[...], axis=1, keepdims=True)    # (B, 1)
        sq0 = jnp.sum(sq0_ref[...], axis=1, keepdims=True)
        sq1 = jnp.sum(sq1_ref[...], axis=1, keepdims=True)

        lab_col = lab_col_ref[...].astype(jnp.float32)         # (B, 1)
        lab_row = lab_row_ref[...].astype(jnp.float32)         # (1, B)
        B = lab_col.shape[0]

        # cos = dot / max(||e0|| * ||e1||, 1e-8)  via a single rsqrt
        # (eps^2 inside the max preserves the original semantics).
        denom_sq = jnp.maximum(sq0 * sq1, jnp.float32(1e-16))
        s = 20.0 * dot * lax.rsqrt(denom_sq)                   # (B, 1)

        # s as a (1, B) row: exact sublane->lane move via diagonal select +
        # cross-sublane sum (no MXU, no transpose-lowering concerns).  For
        # very large B this should become a transpose / row-tiled finalize.
        ri = lax.broadcasted_iota(jnp.int32, (B, B), 0)
        ci = lax.broadcasted_iota(jnp.int32, (B, B), 1)
        s_row = jnp.sum(jnp.where(ri == ci, s, 0.0), axis=0, keepdims=True)

        diff = s - s_row                                       # s[i] - s[j]
        logits = jnp.where(lab_col < lab_row, diff, jnp.float32(-1e12))

        # logsumexp over concat([0], logits.flatten())
        m = jnp.maximum(jnp.max(logits), 0.0)
        total = jnp.sum(jnp.exp(logits - m)) + jnp.exp(0.0 - m)
        out_ref[0, 0] = m + jnp.log(total)


def _round_up(x: int, m: int) -> int:
    return ((x + m - 1) // m) * m


def cosent_loss(emb0: jax.Array, emb1: jax.Array, labels: jax.Array,
                tile_k: int | None = None) -> jax.Array:
    """CoSENT loss given two [B, D] embedding matrices and [B] labels."""
    assert emb0.shape == emb1.shape and emb0.ndim == 2
    B, D = emb0.shape

    # Labels are inputs, so both layouts are free to produce in the wrapper.
    lab_col = labels.astype(jnp.float32).reshape(B, 1)
    lab_row = labels.astype(jnp.float32).reshape(1, B)

    itemsize = jnp.dtype(emb0.dtype).itemsize

    # Generation-aware VMEM capacity (v7x: 64 MiB per TensorCore).
    try:
        vmem_cap = int(pltpu.get_tpu_info().vmem_capacity_bytes)
    except Exception:  # pragma: no cover - conservative fallback
        vmem_cap = 64 * 1024 * 1024
    usable = (vmem_cap * 3) // 4

    # Budget-driven feature tile: largest multiple of 128 whose
    # 2-input x 2-buffer tiles fit the streaming budget; single full-D block
    # whenever it fits (grid collapses to 1 step).
    if tile_k is None:
        tile_budget = min(16 * 1024 * 1024, usable // 2)
        tk = (tile_budget // (2 * 2 * B * itemsize)) // 128 * 128
        tk = min(tk, 8192)          # bound compile-time unrolling
    else:
        tk = (max(tile_k, 128) // 128) * 128
    tk = max(128, min(tk, _round_up(D, 128)))

    grid_k = pl.cdiv(D, tk)
    needs_mask = (D % tk) != 0
    n_chunks = tk // 128

    vmem_limit = (
        2 * 2 * B * tk * itemsize     # double-buffered emb0 / emb1 tiles
        + 3 * B * 128 * 4             # lane-partial accumulators
        + 10 * B * B * 4              # B x B finalize intermediates
        + (2 << 20))                  # labels + headroom
    vmem_limit = int(min(max(vmem_limit, 4 << 20), usable))

    kernel = functools.partial(_cosent_kernel, tk=tk, D=D,
                               n_chunks=n_chunks, needs_mask=needs_mask)

    out = pl.pallas_call(
        kernel,
        out_shape=jax.ShapeDtypeStruct((1, 1), jnp.float32),
        grid=(grid_k,),
        in_specs=[
            pl.BlockSpec((B, 1), lambda k: (0, 0)),     # labels (column)
            pl.BlockSpec((1, B), lambda k: (0, 0)),     # labels (row)
            pl.BlockSpec((B, tk), lambda k: (0, k)),    # emb0 feature tile
            pl.BlockSpec((B, tk), lambda k: (0, k)),    # emb1 feature tile
        ],
        out_specs=pl.BlockSpec((1, 1), lambda k: (0, 0),
                               memory_space=pltpu.MemorySpace.SMEM),
        scratch_shapes=[
            pltpu.VMEM((B, 128), jnp.float32),   # lane partials of sum e0*e1
            pltpu.VMEM((B, 128), jnp.float32),   # lane partials of sum e0*e0
            pltpu.VMEM((B, 128), jnp.float32),   # lane partials of sum e1*e1
        ],
        compiler_params=pltpu.CompilerParams(
            dimension_semantics=("arbitrary",),   # sequential D reduction
            vmem_limit_bytes=vmem_limit),
    )(lab_col, lab_row, emb0, emb1)
    return out[0, 0]


def _reference_loss(emb0, emb1, labels):
    """Pure-JAX reference mirroring the PyTorch forward exactly."""
    emb0 = emb0.astype(jnp.float32)
    emb1 = emb1.astype(jnp.float32)
    cos = jnp.sum(emb0 * emb1, axis=-1) / jnp.maximum(
        jnp.linalg.norm(emb0, axis=-1) * jnp.linalg.norm(emb1, axis=-1), 1e-8)
    out = 20.0 * cos
    out = out[:, None] - out[None, :]
    mask = (labels[:, None] < labels[None, :]).astype(jnp.float32)
    out = out - (1.0 - mask) * 1e12
    flat = jnp.concatenate([jnp.zeros((1,), jnp.float32), out.reshape(-1)])
    return jax.scipy.special.logsumexp(flat)


if __name__ == "__main__":
    B, D = 8, 32
    key = jax.random.PRNGKey(0)
    k0, k1, k2 = jax.random.split(key, 3)

    emb0 = jax.random.normal(k0, (B, D), dtype=jnp.float32)
    emb1 = jax.random.normal(k1, (B, D), dtype=jnp.float32)
    labels = jax.random.randint(k2, (B,), 0, 3).astype(jnp.float32)

    # f32 path (matches PyTorch reference semantics); D=32 < 128 exercises the
    # padded-block lane mask.
    loss = cosent_loss(emb0, emb1, labels)
    jax.block_until_ready(loss)
    ref = _reference_loss(emb0, emb1, labels)
    assert jnp.allclose(loss, ref, atol=1e-4, rtol=1e-4), (loss, ref)

    # Native bf16 embeddings (e.g. bf16 encoder): no wrapper upcast, kernel
    # casts tiles in-register; HBM traffic is halved (biggest lever on v5e).
    emb0_bf = emb0.astype(jnp.bfloat16)
    emb1_bf = emb1.astype(jnp.bfloat16)
    loss_bf = cosent_loss(emb0_bf, emb1_bf, labels)
    jax.block_until_ready(loss_bf)
    ref_bf = _reference_loss(emb0_bf, emb1_bf, labels)
    assert jnp.allclose(loss_bf, ref_bf, atol=1e-3, rtol=1e-3), (loss_bf, ref_bf)

    # Multi-step streaming path with a ragged tail block (forced small tk) to
    # exercise the lane-partial accumulation + tail masking.
    D2 = 448
    e0_big = jax.random.normal(k0, (B, D2), dtype=jnp.float32)
    e1_big = jax.random.normal(k1, (B, D2), dtype=jnp.float32)
    loss_big = cosent_loss(e0_big, e1_big, labels, tile_k=128)
    jax.block_until_ready(loss_big)
    ref_big = _reference_loss(e0_big, e1_big, labels)
    assert jnp.allclose(loss_big, ref_big, atol=1e-4, rtol=1e-4), (loss_big, ref_big)

    print("KERNEL_OK")
</pallas_src>

<mosaic_0001>
module attributes {stable_mosaic.version = 11 : i64} {
  func.func @_cosent_kernel(%arg0: i32, %arg1: memref<8x1xf32, #tpu.memory_space<vmem>>, %arg2: memref<1x8xf32, #tpu.memory_space<vmem>>, %arg3: memref<8x128xf32, #tpu.memory_space<vmem>>, %arg4: memref<8x128xf32, #tpu.memory_space<vmem>>, %arg5: memref<1x1xf32, #tpu.memory_space<smem>>, %arg6: memref<8x128xf32, #tpu.memory_space<vmem>>, %arg7: memref<8x128xf32, #tpu.memory_space<vmem>>, %arg8: memref<8x128xf32, #tpu.memory_space<vmem>>) attributes {dimension_semantics = [#tpu.dimension_semantics<arbitrary>], iteration_bounds = array<i64: 1>, scalar_prefetch = 0 : i64, scratch_operands = 3 : i64, tpu.core_type = #tpu.core_type<tc>, window_params = [{pipeline_mode = #tpu.pipeline_mode<synchronous>, transform_indices = @transform_0, window_bounds = array<i64: 8, 1>}, {pipeline_mode = #tpu.pipeline_mode<synchronous>, transform_indices = @transform_1, window_bounds = array<i64: 1, 8>}, {transform_indices = @transform_2, window_bounds = array<i64: 8, 128>}, {transform_indices = @transform_3, window_bounds = array<i64: 8, 128>}, {transform_indices = @transform_4, window_bounds = array<i64: 1, 1>}]} {
    %c0_i32 = arith.constant 0 : i32
    %0 = arith.cmpi eq, %arg0, %c0_i32 : i32
    %1 = arith.extui %0 : i1 to i32
    %c0_i32_0 = arith.constant 0 : i32
    %2 = arith.cmpi ne, %1, %c0_i32_0 : i32
    scf.if %2 {
      %cst_19 = arith.constant 0.000000e+00 : f32
      %30 = vector.broadcast %cst_19 : f32 to vector<8x128xf32>
      %c0_20 = arith.constant 0 : index
      %c0_21 = arith.constant 0 : index
      %31 = vector.load %arg6[%c0_20, %c0_21] : memref<8x128xf32, #tpu.memory_space<vmem>>, vector<8x128xf32>
      tpu.vector_store %arg6[%c0_20, %c0_21], %30 {strides = array<i32>} : memref<8x128xf32, #tpu.memory_space<vmem>>, vector<8x128xf32>,
      %cst_22 = arith.constant 0.000000e+00 : f32
      %32 = vector.broadcast %cst_22 : f32 to vector<8x128xf32>
      %c0_23 = arith.constant 0 : index
      %c0_24 = arith.constant 0 : index
      %33 = vector.load %arg7[%c0_23, %c0_24] : memref<8x128xf32, #tpu.memory_space<vmem>>, vector<8x128xf32>
      tpu.vector_store %arg7[%c0_23, %c0_24], %32 {strides = array<i32>} : memref<8x128xf32, #tpu.memory_space<vmem>>, vector<8x128xf32>,
      %cst_25 = arith.constant 0.000000e+00 : f32
      %34 = vector.broadcast %cst_25 : f32 to vector<8x128xf32>
      %c0_26 = arith.constant 0 : index
      %c0_27 = arith.constant 0 : index
      %35 = vector.load %arg8[%c0_26, %c0_27] : memref<8x128xf32, #tpu.memory_space<vmem>>, vector<8x128xf32>
      tpu.vector_store %arg8[%c0_26, %c0_27], %34 {strides = array<i32>} : memref<8x128xf32, #tpu.memory_space<vmem>>, vector<8x128xf32>,
    } else {
    }
    %c0 = arith.constant 0 : index
    %c0_1 = arith.constant 0 : index
    %3 = vector.load %arg3[%c0, %c0_1] : memref<8x128xf32, #tpu.memory_space<vmem>>, vector<8x128xf32>
    %c0_2 = arith.constant 0 : index
    %c0_3 = arith.constant 0 : index
    %4 = vector.load %arg4[%c0_2, %c0_3] : memref<8x128xf32, #tpu.memory_space<vmem>>, vector<8x128xf32>
    %5 = tpu.iota {dimensions = array<i32: 1>} : vector<8x128xi32>
    %c128_i32 = arith.constant 128 : i32
    %6 = arith.muli %arg0, %c128_i32 : i32
    %7 = vector.broadcast %6 : i32 to vector<8x128xi32>
    %8 = arith.addi %7, %5 : vector<8x128xi32>
    %c32_i32 = arith.constant 32 : i32
    %9 = vector.broadcast %c32_i32 : i32 to vector<8x128xi32>
    %10 = arith.cmpi slt, %8, %9 : vector<8x128xi32>
    %cst = arith.constant 0.000000e+00 : f32
    %11 = vector.broadcast %cst : f32 to vector<8x128xf32>
    %12 = arith.select %10, %3, %11 : vector<8x128xi1>, vector<8x128xf32>
    %cst_4 = arith.constant 0.000000e+00 : f32
    %13 = vector.broadcast %cst_4 : f32 to vector<8x128xf32>
    %14 = arith.select %10, %4, %13 : vector<8x128xi1>, vector<8x128xf32>
    %c0_5 = arith.constant 0 : index
    %c0_6 = arith.constant 0 : index
    %15 = vector.load %arg6[%c0_5, %c0_6] : memref<8x128xf32, #tpu.memory_space<vmem>>, vector<8x128xf32>
    %c0_7 = arith.constant 0 : index
    %c0_8 = arith.constant 0 : index
    %16 = vector.load %arg7[%c0_7, %c0_8] : memref<8x128xf32, #tpu.memory_space<vmem>>, vector<8x128xf32>
    %c0_9 = arith.constant 0 : index
    %c0_10 = arith.constant 0 : index
    %17 = vector.load %arg8[%c0_9, %c0_10] : memref<8x128xf32, #tpu.memory_space<vmem>>, vector<8x128xf32>
    %18 = arith.mulf %12, %14 : vector<8x128xf32>
    %19 = arith.addf %15, %18 : vector<8x128xf32>
    %20 = arith.mulf %12, %12 : vector<8x128xf32>
    %21 = arith.addf %16, %20 : vector<8x128xf32>
    %22 = arith.mulf %14, %14 : vector<8x128xf32>
    %23 = arith.addf %17, %22 : vector<8x128xf32>
    %c0_11 = arith.constant 0 : index
    %c0_12 = arith.constant 0 : index
    %24 = vector.load %arg6[%c0_11, %c0_12] : memref<8x128xf32, #tpu.memory_space<vmem>>, vector<8x128xf32>
    tpu.vector_store %arg6[%c0_11, %c0_12], %19 {strides = array<i32>} : memref<8x128xf32, #tpu.memory_space<vmem>>, vector<8x128xf32>,
    %c0_13 = arith.constant 0 : index
    %c0_14 = arith.constant 0 : index
    %25 = vector.load %arg7[%c0_13, %c0_14] : memref<8x128xf32, #tpu.memory_space<vmem>>, vector<8x128xf32>
    tpu.vector_store %arg7[%c0_13, %c0_14], %21 {strides = array<i32>} : memref<8x128xf32, #tpu.memory_space<vmem>>, vector<8x128xf32>,
    %c0_15 = arith.constant 0 : index
    %c0_16 = arith.constant 0 : index
    %26 = vector.load %arg8[%c0_15, %c0_16] : memref<8x128xf32, #tpu.memory_space<vmem>>, vector<8x128xf32>
    tpu.vector_store %arg8[%c0_15, %c0_16], %23 {strides = array<i32>} : memref<8x128xf32, #tpu.memory_space<vmem>>, vector<8x128xf32>,
    %c0_i32_17 = arith.constant 0 : i32
    %27 = arith.cmpi eq, %arg0, %c0_i32_17 : i32
    %28 = arith.extui %27 : i1 to i32
    %c0_i32_18 = arith.constant 0 : i32
    %29 = arith.cmpi ne, %28, %c0_i32_18 : i32
    scf.if %29 {
      %c0_19 = arith.constant 0 : index
      %c0_20 = arith.constant 0 : index
      %30 = vector.load %arg6[%c0_19, %c0_20] : memref<8x128xf32, #tpu.memory_space<vmem>>, vector<8x128xf32>
      %cst_21 = arith.constant dense<0.000000e+00> : vector<8xf32>
      %31 = vector.multi_reduction <add>, %30, %cst_21 [1] : vector<8x128xf32> to vector<8xf32>
      %32 = vector.shape_cast %31 : vector<8xf32> to vector<8x1xf32>
      %c0_22 = arith.constant 0 : index
      %c0_23 = arith.constant 0 : index
      %33 = vector.load %arg7[%c0_22, %c0_23] : memref<8x128xf32, #tpu.memory_space<vmem>>, vector<8x128xf32>
      %cst_24 = arith.constant dense<0.000000e+00> : vector<8xf32>
      %34 = vector.multi_reduction <add>, %33, %cst_24 [1] : vector<8x128xf32> to vector<8xf32>
      %35 = vector.shape_cast %34 : vector<8xf32> to vector<8x1xf32>
      %c0_25 = arith.constant 0 : index
      %c0_26 = arith.constant 0 : index
      %36 = vector.load %arg8[%c0_25, %c0_26] : memref<8x128xf32, #tpu.memory_space<vmem>>, vector<8x128xf32>
      %cst_27 = arith.constant dense<0.000000e+00> : vector<8xf32>
      %37 = vector.multi_reduction <add>, %36, %cst_27 [1] : vector<8x128xf32> to vector<8xf32>
      %38 = vector.shape_cast %37 : vector<8xf32> to vector<8x1xf32>
      %c0_28 = arith.constant 0 : index
      %c0_29 = arith.constant 0 : index
      %39 = vector.load %arg1[%c0_28, %c0_29] : memref<8x1xf32, #tpu.memory_space<vmem>>, vector<8x1xf32>
      %c0_30 = arith.constant 0 : index
      %c0_31 = arith.constant 0 : index
      %40 = vector.load %arg2[%c0_30, %c0_31] : memref<1x8xf32, #tpu.memory_space<vmem>>, vector<1x8xf32>
      %41 = arith.mulf %35, %38 : vector<8x1xf32>
      %cst_32 = arith.constant 1.000000e-16 : f32
      %42 = vector.broadcast %cst_32 : f32 to vector<8x1xf32>
      %43 = arith.maximumf %41, %42 : vector<8x1xf32>
      %cst_33 = arith.constant 2.000000e+01 : f32
      %44 = vector.broadcast %cst_33 : f32 to vector<8x1xf32>
      %45 = arith.mulf %44, %32 : vector<8x1xf32>
      %46 = math.rsqrt %43 : vector<8x1xf32>
      %47 = arith.mulf %45, %46 : vector<8x1xf32>
      %48 = tpu.iota {dimensions = array<i32: 0>} : vector<8x8xi32>
      %49 = tpu.iota {dimensions = array<i32: 1>} : vector<8x8xi32>
      %50 = arith.cmpi eq, %48, %49 : vector<8x8xi32>
      %cst_34 = arith.constant 0.000000e+00 : f32
      %51 = vector.shape_cast %47 : vector<8x1xf32> to vector<8x1xf32>
      %52 = vector.broadcast %51 : vector<8x1xf32> to vector<8x8xf32>
      %53 = vector.broadcast %cst_34 : f32 to vector<8x8xf32>
      %54 = arith.select %50, %52, %53 : vector<8x8xi1>, vector<8x8xf32>
      %cst_35 = arith.constant dense<0.000000e+00> : vector<8xf32>
      %55 = vector.multi_reduction <add>, %54, %cst_35 [0] : vector<8x8xf32> to vector<8xf32>
      %56 = vector.shape_cast %55 : vector<8xf32> to vector<1x8xf32>
      %57 = vector.broadcast %47 : vector<8x1xf32> to vector<8x8xf32>
      %58 = vector.broadcast %56 : vector<1x8xf32> to vector<8x8xf32>
      %59 = arith.subf %57, %58 : vector<8x8xf32>
      %60 = vector.broadcast %39 : vector<8x1xf32> to vector<8x8xf32>
      %61 = vector.broadcast %40 : vector<1x8xf32> to vector<8x8xf32>
      %62 = arith.cmpf olt, %60, %61 : vector<8x8xf32>
      %cst_36 = arith.constant -9.99999995E+11 : f32
      %63 = vector.broadcast %cst_36 : f32 to vector<8x8xf32>
      %64 = arith.select %62, %59, %63 : vector<8x8xi1>, vector<8x8xf32>
      %65 = vector.shape_cast %64 : vector<8x8xf32> to vector<1x8x8xf32>
      %cst_37 = arith.constant dense<0xFF800000> : vector<1xf32>
      %66 = vector.multi_reduction <maximumf>, %65, %cst_37 [1, 2] : vector<1x8x8xf32> to vector<1xf32>
      %67 = vector.shape_cast %66 : vector<1xf32> to vector<1x1x1xf32>
      %68 = vector.extract %67[0, 0, 0] : f32 from vector<1x1x1xf32>
      %cst_38 = arith.constant 0.000000e+00 : f32
      %69 = arith.maximumf %68, %cst_38 : f32
      %70 = vector.broadcast %69 : f32 to vector<8x8xf32>
      %71 = arith.subf %64, %70 : vector<8x8xf32>
      %72 = math.exp %71 : vector<8x8xf32>
      %73 = vector.shape_cast %72 : vector<8x8xf32> to vector<1x8x8xf32>
      %cst_39 = arith.constant dense<0.000000e+00> : vector<1xf32>
      %74 = vector.multi_reduction <add>, %73, %cst_39 [1, 2] : vector<1x8x8xf32> to vector<1xf32>
      %75 = vector.shape_cast %74 : vector<1xf32> to vector<1x1x1xf32>
      %76 = vector.extract %75[0, 0, 0] : f32 from vector<1x1x1xf32>
      %cst_40 = arith.constant 0.000000e+00 : f32
      %77 = arith.subf %cst_40, %69 : f32
      %78 = math.exp %77 : f32
      %79 = arith.addf %76, %78 : f32
      %80 = math.log %79 : f32
      %81 = arith.addf %69, %80 : f32
      %c0_41 = arith.constant 0 : index
      %c0_42 = arith.constant 0 : index
      %82 = memref.load %arg5[%c0_41, %c0_42] : memref<1x1xf32, #tpu.memory_space<smem>>
      memref.store %81, %arg5[%c0_41, %c0_42] : memref<1x1xf32, #tpu.memory_space<smem>>
    } else {
    }
    return
  }
  func.func @transform_0(%arg0: i32) -> (i32, i32) {
    %c0_i32 = arith.constant 0 : i32
    %c0_i32_0 = arith.constant 0 : i32
    %c0_i32_1 = arith.constant 0 : i32
    return %c0_i32, %c0_i32_0 : i32, i32
  }
  func.func @transform_1(%arg0: i32) -> (i32, i32) {
    %c0_i32 = arith.constant 0 : i32
    %c0_i32_0 = arith.constant 0 : i32
    %c0_i32_1 = arith.constant 0 : i32
    return %c0_i32, %c0_i32_0 : i32, i32
  }
  func.func @transform_2(%arg0: i32) -> (i32, i32) {
    %c0_i32 = arith.constant 0 : i32
    %c0_i32_0 = arith.constant 0 : i32
    return %c0_i32, %arg0 : i32, i32
  }
  func.func @transform_3(%arg0: i32) -> (i32, i32) {
    %c0_i32 = arith.constant 0 : i32
    %c0_i32_0 = arith.constant 0 : i32
    return %c0_i32, %arg0 : i32, i32
  }
  func.func @transform_4(%arg0: i32) -> (i32, i32) {
    %c0_i32 = arith.constant 0 : i32
    %c0_i32_0 = arith.constant 0 : i32
    %c0_i32_1 = arith.constant 0 : i32
    return %c0_i32, %c0_i32_0 : i32, i32
  }
}

</mosaic_0001>

<llo_original>
// kernel: tpu_custom_call.1
$region0: #{tpu_custom_call.1}
  #allocation0 [shape = 'u32[]', space=smem, size = 0x4, offset = 0x4, fixed_abs, tag = 'smem constant byte address 0x4 - core index']
  #allocation1 [shape = 'u32[72,128]{1,0:T(1,128)}', space=vmem, size = 0x9000, scoped, tag = 'internal scratch']
  #allocation2 [shape = 'f32[8,128]{1,0:T(8,128)}', space=vmem, size = 0x1000, scoped, tag = 'scratch operand']
  #allocation3 [shape = 'f32[8,128]{1,0:T(8,128)}', space=vmem, size = 0x1000, scoped, tag = 'scratch operand']
  #allocation4 [shape = 'f32[8,128]{1,0:T(8,128)}', space=vmem, size = 0x1000, scoped, tag = 'scratch operand']
  %s0 = inlined_call_operand.vmem [shape: f32[8,1], index: 0, kind: input, shape index: {}]
  %s1 = inlined_call_operand.vmem [shape: f32[1,8], index: 1, kind: input, shape index: {}]
  %s2 = inlined_call_operand.vmem [shape: f32[8,32], index: 2, kind: input, shape index: {}]
  %s3 = inlined_call_operand.hbm [shape: f32[8,32], index: 3, kind: input, shape index: {}]
  %s4 = inlined_call_operand.hbm [shape: f32[1,1], index: 4, kind: output, shape index: {}]
  %s5 = sld [smem:[#allocation0]]
  $region38: #{tpu_custom_call.1} parent=0
    _
  %s7 = ssub.s32 1, %s5
  %s8 = scalar_select 0, %s7, %s5
  $region1: #{tpu_custom_call.1} parent=0
    #allocation5 [shape = 'u8[4096]{0}', space=vmem, size = 0x1000, scoped, tag = 'input window, operand 3, single buffered']
    #allocation6 [shape = 's32[1]{0}', space=sflag, size = 0x4, scoped, tag = 'scoped memory for tpu_custom_call.1']
    #allocation7 [shape = 's32[1]{0}', space=sflag, size = 0x4, scoped, tag = 'scoped memory for tpu_custom_call.1']
    #allocation8 [shape = 'u8[512]{0}', space=smem, size = 0x200, scoped, tag = 'output window, operand 0, single buffered']
    %9 = vsyncpa [#allocation6], 0
    %10 = vsyncpa [#allocation7], 0
    // Predicated region
    $region2: #{tpu_custom_call.1} parent=1 // pred_check
      _
    $region3: #{tpu_custom_call.1} parent=1 // pred_check_branch
      %12 = sbr.rel (0) target = $region5
    $region4: #{tpu_custom_call.1} parent=1 // pred_region
      _
    $region5: #{tpu_custom_call.1} parent=1 // pred_fallthru
      _
    // Predicated region
    $region6: #{tpu_custom_call.1} parent=1 // pred_check
      _
    $region7: #{tpu_custom_call.1} parent=1 // pred_check_branch
      %14 = sbr.rel (0) target = $region9
    $region8: #{tpu_custom_call.1} parent=1 // pred_region
      _
    $region9: #{tpu_custom_call.1} parent=1 // pred_fallthru
      _
    // Predicated region
    $region10: #{tpu_custom_call.1} parent=1 // pred_check
      _
    $region11: #{tpu_custom_call.1} parent=1 // pred_check_branch
      %16 = sbr.rel (0) target = $region13
    $region12: #{tpu_custom_call.1} parent=1 // pred_region
      _
    $region13: #{tpu_custom_call.1} parent=1 // pred_fallthru
      _
    // Predicated region
    $region14: #{tpu_custom_call.1} parent=1 // pred_check
      _
    $region15: #{tpu_custom_call.1} parent=1 // pred_check_branch
      %18 = sbr.rel (0) target = $region17
    $region16: #{tpu_custom_call.1} parent=1 // pred_region
      %20 = vsyncadd [#allocation6], 0
      %s22 = sshll.u32 %s3, 4
      %s23 = int_to_ptr.hbm [resolvable:$true] %s22
      %s24 = sshll.u32 [#allocation5], 4
      %s25 = int_to_ptr.vmem [resolvable:$true] %s24
      %27 = dma.hbm_to_vmem [thread:$0]  %s23, 128, %s25, [#allocation6]
    $region17: #{tpu_custom_call.1} parent=1 // pred_fallthru
      _
    // Predicated region
    $region18: #{tpu_custom_call.1} parent=1 // pred_check
      _
    $region19: #{tpu_custom_call.1} parent=1 // pred_check_branch
      %29 = sbr.rel (0) target = $region21
    $region20: #{tpu_custom_call.1} parent=1 // pred_region
      %31 = dma.done [#allocation6], 128
    $region21: #{tpu_custom_call.1} parent=1 // pred_fallthru
      _
    %p32 = scmp.eq.s32.totalorder 0, 0
    // Predicated region
    $region22: #{tpu_custom_call.1} parent=1 // pred_check
      %p33 = pneg %p32
    $region23: #{tpu_custom_call.1} parent=1 // pred_check_branch
      %35 = sbr.rel (%p33) target = $region25
    $region24: #{tpu_custom_call.1} parent=1 // pred_region
      %36 = vst [vmem:[#allocation2] sm:$0xff] 0.0
      %37 = vst [vmem:[#allocation3] sm:$0xff] 0.0
      %38 = vst [vmem:[#allocation4] sm:$0xff] 0.0
    $region25: #{tpu_custom_call.1} parent=1 // pred_fallthru
      _
    %v39 = vld [vmem:[%s2] sm:$0xff]
    %v40 = vld [vmem:[#allocation5] sm:$0xff]
    %v41 = vlaneseq
    %v42 = vand.u32 %v41, 127
    %s43 = smul.u32 0, 128
    %v44 = vstv %s43
    %v45 = vadd.s32 %v44, %v42
    %vm46 = vcmp.lt.s32.totalorder %v45, 32
    %v47 = vsel %vm46, %v39, 0.0
    %v48 = vsel %vm46, %v40, 0.0
    %v49 = vld [vmem:[#allocation2] sm:$0xff]
    %v50 = vld [vmem:[#allocation3] sm:$0xff]
    %v51 = vld [vmem:[#allocation4] sm:$0xff]
    %v52 = vmul.f32 %v47, %v48
    %v53 = vadd.f32 %v49, %v52
    %v54 = vmul.f32 %v47, %v47
    %v55 = vadd.f32 %v50, %v54
    %v56 = vmul.f32 %v48, %v48
    %v57 = vadd.f32 %v51, %v56
    %58 = vst [vmem:[#allocation2] sm:$0xff] %v53
    %59 = vst [vmem:[#allocation3] sm:$0xff] %v55
    %60 = vst [vmem:[#allocation4] sm:$0xff] %v57
    // Predicated region
    $region26: #{tpu_custom_call.1} parent=1 // pred_check
      %p61 = pneg %p32
    $region27: #{tpu_custom_call.1} parent=1 // pred_check_branch
      %63 = sbr.rel (%p61) target = $region29
    $region28: #{tpu_custom_call.1} parent=1 // pred_region
      %v64 = vld [vmem:[#allocation2] sm:$0xff]
      %65 = vadd.xlane.f32.xlu0 %v64
      %v66 = vpop.xlane.xlu0 %65
      %v67 = vld [vmem:[#allocation3] sm:$0xff]
      %68 = vadd.xlane.f32.xlu0 %v67
      %v69 = vpop.xlane.xlu0 %68
      %v70 = vld [vmem:[#allocation4] sm:$0xff]
      %71 = vadd.xlane.f32.xlu0 %v70
      %v72 = vpop.xlane.xlu0 %71
      %v73 = vld [vmem:[%s0] sm:$0xff]
      %v74 = vld [vmem:[%s1] sm:$0x1]
      %v75 = vmul.f32 %v69, %v72
      %v76 = vmax.f32 %v75, 1e-16
      %v77 = vmul.f32 %v66, 20.0
      %v78 = vrsqrt.pop %v76
      %v79 = vmul.f32 %v78, %v76
      %v80 = vmul.f32 %v79, %v78
      %v81 = vmul.f32 0.5, %v80
      %v82 = vsub.f32 1.5, %v81
      %v83 = vmul.f32 %v78, %v82
      %vm84 = vweird.f32 %v76
      %vm85 = vweird.f32 %v78
      %vm86 = vmor %vm84, %vm85
      %v87 = vsel %vm86, %v78, %v83
      %v88 = vmul.f32 %v77, %v87
      %v89 = vlaneseq
      %v90 = vshrl.u32 %v89, 7
      %vm91 = vcmp.eq.s32.totalorder %v90, %v42
      %v92 = vsel %vm91, %v88, 0.0
      %vm93 = vcmask 64512
      %v94 = vsel %vm93, %v92, 0.0
      %v95 = vrot.slane %v94, 4
      %v96 = vadd.f32 %v94, %v95
      %v97 = vrot.slane %v96, 2
      %v98 = vadd.f32 %v96, %v97
      %v99 = vrot.slane %v98, 1
      %v100 = vadd.f32 %v98, %v99
      %v101 = vsub.f32 %v88, %v100
      %103 = vset.pattern.permute.xlu0 0
      %104 = vperm.xlu0 %103, %v73
      %v105 = vpop.permute.xlu0 %104
      %v108 = vperm.slane %v74, 0
      %vm110 = vcmp.lt.f32.partialorder %v105, %v108
      %v111 = vsel %vm110, %v101, -1e+12
      %v112 = vsel %vm93, %v111, -inf
      %113 = vmax.xlane.f32.xlu0 %v112
      %v114 = vpop.xlane.xlu0 %113
      %v115 = vrot.slane %v114, 4
      %v116 = vmax.f32 %v114, %v115
      %v117 = vrot.slane %v116, 2
      %v118 = vmax.f32 %v116, %v117
      %v119 = vrot.slane %v118, 1
      %v120 = vmax.f32 %v118, %v119
      %s121 = vtos %v120
      %s122 = smax.f32 %s121, 0.0
      %v123 = vstv %s122
      %v124 = vsub.f32 %v111, %v123
      %v125 = vmul.f32 %v124, 1.442695
      %v126 = vpow.pop %v125
      %v127 = vsel %vm93, %v126, 0.0
      %128 = vadd.xlane.f32.xlu0 %v127
      %v129 = vpop.xlane.xlu0 %128
      %v130 = vrot.slane %v129, 4
      %v131 = vadd.f32 %v129, %v130
      %v132 = vrot.slane %v131, 2
      %v133 = vadd.f32 %v131, %v132
      %v134 = vrot.slane %v133, 1
      %v135 = vadd.f32 %v133, %v134
      %s136 = vtos %v135
      %s137 = ssub.f32 0.0, %s122
      %v138 = vstv %s137
      %v139 = vmul.f32 %v138, 1.442695
      %v140 = vpow.pop %v139
      %s141 = vtos %v140
      %s142 = sadd.f32 %s136, %s141
      %v143 = vstv %s142
      %v144 = vlog2.pop %v143
      %v145 = vmul.f32 %v144, 0.6931472
      %s146 = vtos %v145
      %s147 = sadd.f32 %s122, %s146
      %s148 = scalar_lea.smem [#allocation8], 0
      %149 = sst [smem:[%s148]] %s147
    $region29: #{tpu_custom_call.1} parent=1 // pred_fallthru
      _
    // Predicated region
    $region30: #{tpu_custom_call.1} parent=1 // pred_check
      _
    $region31: #{tpu_custom_call.1} parent=1 // pred_check_branch
      %151 = sbr.rel (0) target = $region33
    $region32: #{tpu_custom_call.1} parent=1 // pred_region
      %153 = vsyncadd [#allocation7], 0
      %s155 = sshll.u32 %s4, 4
      %s156 = int_to_ptr.hbm [resolvable:$true] %s155
      %158 = dma.smem_to_hbm [#allocation8], 16, %s156, [#allocation7]
    $region33: #{tpu_custom_call.1} parent=1 // pred_fallthru
      _
    // Predicated region
    $region34: #{tpu_custom_call.1} parent=1 // pred_check
      _
    $region35: #{tpu_custom_call.1} parent=1 // pred_check_branch
      %160 = sbr.rel (0) target = $region37
    $region36: #{tpu_custom_call.1} parent=1 // pred_region
      %162 = dma.done [#allocation7], 16
    $region37: #{tpu_custom_call.1} parent=1 // pred_fallthru
      _
    %163 = sfence
    %164 = vsyncpa [#allocation6], 1
    %165 = vsyncpa [#allocation7], 1

</llo_original>
